<compile_context>
chip_gen: v7x
topology: tpu7x:2x2x1
jax: 0.10.0
libtpu: 0.0.40
codegen_flags: <defaults>
</compile_context>

<pallas_src>
import jax
import jax.numpy as jnp
import numpy as np
from jax.experimental import pallas as pl
from jax.experimental.pallas import tpu as pltpu


def _round_up(x, m):
    return (x + m - 1) // m * m


def _vmem_budget_bytes():
    """Chip-aware VMEM budget (also used as vmem_limit_bytes)."""
    try:
        kind = jax.devices()[0].device_kind.lower()
    except Exception:
        kind = ""
    if "v7" in kind:
        return 48 << 20          # v7x: 64 MiB physical per TensorCore
    if "v5" in kind or "v6" in kind:
        return 96 << 20          # v5e / v6e: 128 MiB physical
    return 32 << 20              # unknown chip: known-safe default


def _pick_tiling(n, hidden, mlp_hid, mlp_out, wbytes, vmem_budget):
    """Derive (nk, tile_k, kpad, opad) from an explicit VMEM byte budget."""
    opad = _round_up(mlp_out, 128)
    kpad0 = _round_up(mlp_hid, 128)

    # Resident cost (independent of tile_k): feat, f32 output accumulator,
    # packed gamma/beta, b2 (x2 headroom for Pallas double-buffering).
    fixed = (2 * n * hidden * wbytes      # feat
             + 2 * n * opad * 4           # resident f32 output accumulator
             + 2 * 2 * kpad0 * 4          # packed gamma/beta
             + 2 * opad * 4)              # b2
    usable = int(vmem_budget * 0.85) - fixed

    def per_tile(tk):
        # Double-buffered w1 / w2 tiles + ~one (n, tk) f32 slab of live values.
        return 2 * (hidden + opad) * tk * wbytes + n * tk * 4

    cap = 128
    for cand in range(2048, 127, -128):
        if per_tile(cand) <= usable:
            cap = cand
            break
    # TODO(synk): if even tile_k=128 does not fit (huge hidden), tile hidden too.

    # Balanced split — never collapses to many tiny tiles when kpad0 % cap != 0.
    nk = -(-kpad0 // cap)
    tile_k = _round_up(-(-kpad0 // nk), 128)
    kpad = nk * tile_k
    return nk, tile_k, kpad, opad


def _make_kernel(n_batch, eps):
    inv_n = 1.0 / float(n_batch)

    def kernel(x_ref, w1_ref, gb_ref, w2_ref, b2_ref, o_ref):
        k = pl.program_id(0)

        # ---- Linear1 on this mlp_hid tile: MXU, native-dtype operands, f32 acc ----
        h = jnp.dot(x_ref[...], w1_ref[...],
                    preferred_element_type=jnp.float32)          # (N, tile_k) f32

        # ---- BatchNorm1d (training mode): two-pass centered batch stats (f32) ----
        mean = jnp.sum(h, axis=0, keepdims=True) * inv_n         # (1, tile_k)
        centered = h - mean
        var = jnp.sum(centered * centered, axis=0, keepdims=True) * inv_n

        gb = gb_ref[k]                                           # (2, tile_k): [gamma; beta]
        scale = gb[0:1, :] * jax.lax.rsqrt(var + eps)            # EUP rsqrt (free slot)
        h_act = jnp.maximum(centered * scale + gb[1:2, :], 0.0)  # folded BN + ReLU

        # ---- Linear2: accumulate directly into the resident f32 output block ----
        @pl.when(k == 0)
        def _():
            o_ref[...] = jnp.broadcast_to(b2_ref[...], o_ref.shape)   # seed with b2

        o_ref[...] += jnp.dot(h_act.astype(w2_ref.dtype), w2_ref[...],
                              preferred_element_type=jnp.float32)

    return kernel


def two_mlp_bn(feat, w1, b1, gamma, beta, w2, b2, *,
               mxu_dtype=jnp.bfloat16, eps=1e-5, vmem_budget_bytes=None):
    """feat: (N, hidden); w1: (hidden, mlp_hid); w2: (mlp_hid, mlp_out).

    b1 is accepted (mirrors the PyTorch module) but unused: training-mode
    BatchNorm cancels the Linear1 bias exactly.  With the default bf16 MXU
    operands the result matches the f32 reference to ~1e-2 absolute; pass
    mxu_dtype=jnp.float32 for bit-tight agreement.
    """
    del b1
    n, hidden = feat.shape
    mlp_hid, mlp_out = w2.shape
    f32 = jnp.float32

    wbytes = np.dtype(mxu_dtype).itemsize
    budget = _vmem_budget_bytes() if vmem_budget_bytes is None else vmem_budget_bytes
    nk, tile_k, kpad, opad = _pick_tiling(n, hidden, mlp_hid, mlp_out, wbytes, budget)

    # Zero-padded, MXU-dtype operands.  Padded w1 columns give h == 0 there; with
    # gamma/beta padded to 0 the padded activations stay 0 and padded w2 rows are
    # 0, so padding never contributes to the output.
    x = feat.astype(mxu_dtype)
    w1p = jnp.zeros((hidden, kpad), mxu_dtype).at[:, :mlp_hid].set(w1.astype(mxu_dtype))
    w2p = jnp.zeros((kpad, opad), mxu_dtype).at[:mlp_hid, :mlp_out].set(w2.astype(mxu_dtype))
    b2p = jnp.zeros((1, opad), f32).at[0, :mlp_out].set(b2.reshape(-1).astype(f32))

    gpad = jnp.zeros((kpad,), f32).at[:mlp_hid].set(gamma.reshape(-1).astype(f32))
    bpad = jnp.zeros((kpad,), f32).at[:mlp_hid].set(beta.reshape(-1).astype(f32))
    gb = jnp.stack([gpad.reshape(nk, tile_k),
                    bpad.reshape(nk, tile_k)], axis=1)           # (nk, 2, tile_k)

    grid_spec = pltpu.PrefetchScalarGridSpec(
        num_scalar_prefetch=0,
        grid=(nk,),
        in_specs=[
            pl.BlockSpec((n, hidden), lambda k: (0, 0)),          # feat: resident
            pl.BlockSpec((hidden, tile_k), lambda k: (0, k)),     # w1 column tile (streamed)
            pl.BlockSpec((nk, 2, tile_k), lambda k: (0, 0, 0)),   # gamma/beta: resident
            pl.BlockSpec((tile_k, opad), lambda k: (k, 0)),       # w2 row tile (streamed)
            pl.BlockSpec((1, opad), lambda k: (0, 0)),            # b2: resident
        ],
        # Constant block index across the reduction axis -> resident f32 output
        # that doubles as the Linear2 accumulator (lane-dense unmasked store).
        out_specs=pl.BlockSpec((n, opad), lambda k: (0, 0)),
    )

    out_pad = pl.pallas_call(
        _make_kernel(n_batch=n, eps=eps),
        out_shape=jax.ShapeDtypeStruct((n, opad), f32),
        grid_spec=grid_spec,
        compiler_params=pltpu.CompilerParams(
            dimension_semantics=("arbitrary",),    # mlp_hid axis is a reduction
            vmem_limit_bytes=budget,
        ),
    )(x, w1p, gb, w2p, b2p)

    return out_pad[:, :mlp_out].astype(feat.dtype)


def init_params(key, hidden, mlp_hid, mlp_out):
    """Deterministic init mimicking PyTorch nn.Linear defaults (U[-1/sqrt(fan_in), +])."""
    k1, k2, k3, k4 = jax.random.split(key, 4)
    bound1 = 1.0 / jnp.sqrt(hidden)
    w1 = jax.random.uniform(k1, (hidden, mlp_hid), jnp.float32, -bound1, bound1)
    b1 = jax.random.uniform(k2, (1, mlp_hid), jnp.float32, -bound1, bound1)
    bound2 = 1.0 / jnp.sqrt(mlp_hid)
    w2 = jax.random.uniform(k3, (mlp_hid, mlp_out), jnp.float32, -bound2, bound2)
    b2 = jax.random.uniform(k4, (1, mlp_out), jnp.float32, -bound2, bound2)
    gamma = jnp.ones((1, mlp_hid), jnp.float32)   # BatchNorm1d weight
    beta = jnp.zeros((1, mlp_hid), jnp.float32)   # BatchNorm1d bias
    return w1, b1, gamma, beta, w2, b2


if __name__ == "__main__":
    # Small shapes consistent with the module: hidden=32, mlp_hid=64, mlp_out=16, batch=8
    N, HIDDEN, MLP_HID, MLP_OUT = 8, 32, 64, 16

    key = jax.random.PRNGKey(0)
    k_x, k_p = jax.random.split(key)
    feat = jax.random.normal(k_x, (N, HIDDEN), jnp.float32)
    w1, b1, gamma, beta, w2, b2 = init_params(k_p, HIDDEN, MLP_HID, MLP_OUT)

    # Reference in plain JAX (same math as the PyTorch module in training mode,
    # *including* b1 — its exact cancellation by BN is part of what we verify).
    h = feat @ w1 + b1
    mean = jnp.mean(h, axis=0, keepdims=True)
    var = jnp.mean((h - mean) ** 2, axis=0, keepdims=True)
    ref = jnp.maximum((h - mean) / jnp.sqrt(var + 1e-5) * gamma + beta, 0.0) @ w2 + b2

    # 1) Exactness check with f32 MXU operands.
    out_f32 = two_mlp_bn(feat, w1, b1, gamma, beta, w2, b2, mxu_dtype=jnp.float32)
    jax.block_until_ready(out_f32)
    assert out_f32.shape == (N, MLP_OUT)
    assert jnp.allclose(out_f32, ref, atol=1e-4, rtol=1e-4)

    # 2) Default configuration: bf16 MXU operands, f32 accumulation (HBM-roofline path).
    out_bf16 = two_mlp_bn(feat, w1, b1, gamma, beta, w2, b2)
    jax.block_until_ready(out_bf16)
    assert out_bf16.shape == (N, MLP_OUT)
    assert jnp.allclose(out_bf16, ref, atol=5e-2, rtol=5e-2)

    print("KERNEL_OK")
</pallas_src>

<mosaic_0001>
module attributes {stable_mosaic.version = 11 : i64} {
  func.func @kernel(%arg0: i32, %arg1: memref<8x32xf32, #tpu.memory_space<vmem>>, %arg2: memref<32x128xf32, #tpu.memory_space<vmem>>, %arg3: memref<1x2x128xf32, #tpu.memory_space<vmem>>, %arg4: memref<128x128xf32, #tpu.memory_space<vmem>>, %arg5: memref<1x128xf32, #tpu.memory_space<vmem>>, %arg6: memref<8x128xf32, #tpu.memory_space<vmem>>) attributes {dimension_semantics = [#tpu.dimension_semantics<arbitrary>], iteration_bounds = array<i64: 1>, scalar_prefetch = 0 : i64, scratch_operands = 0 : i64, tpu.core_type = #tpu.core_type<tc>, window_params = [{pipeline_mode = #tpu.pipeline_mode<synchronous>, transform_indices = @transform_0, window_bounds = array<i64: 8, 32>}, {transform_indices = @transform_1, window_bounds = array<i64: 32, 128>}, {pipeline_mode = #tpu.pipeline_mode<synchronous>, transform_indices = @transform_2, window_bounds = array<i64: 1, 2, 128>}, {transform_indices = @transform_3, window_bounds = array<i64: 128, 128>}, {pipeline_mode = #tpu.pipeline_mode<synchronous>, transform_indices = @transform_4, window_bounds = array<i64: 1, 128>}, {pipeline_mode = #tpu.pipeline_mode<synchronous>, transform_indices = @transform_5, window_bounds = array<i64: 8, 128>}]} {
    %c0 = arith.constant 0 : index
    %c0_0 = arith.constant 0 : index
    %0 = vector.load %arg1[%c0, %c0_0] : memref<8x32xf32, #tpu.memory_space<vmem>>, vector<8x32xf32>
    %c0_1 = arith.constant 0 : index
    %c0_2 = arith.constant 0 : index
    %1 = vector.load %arg2[%c0_1, %c0_2] : memref<32x128xf32, #tpu.memory_space<vmem>>, vector<32x128xf32>
    %cst = arith.constant dense<0.000000e+00> : vector<8x128xf32>
    %2 = tpu.matmul %0, %1, %cst {dimension_numbers = #tpu.dot_dimension_numbers<[1], [0], [0], [1], [0, 0, 1, 1], [], []>} : vector<8x32xf32>, vector<32x128xf32>, vector<8x128xf32> -> vector<8x128xf32>
    %cst_3 = arith.constant dense<0.000000e+00> : vector<128xf32>
    %3 = vector.multi_reduction <add>, %2, %cst_3 [0] : vector<8x128xf32> to vector<128xf32>
    %4 = vector.shape_cast %3 : vector<128xf32> to vector<1x128xf32>
    %cst_4 = arith.constant 1.250000e-01 : f32
    %5 = vector.broadcast %cst_4 : f32 to vector<1x128xf32>
    %6 = arith.mulf %4, %5 : vector<1x128xf32>
    %7 = vector.broadcast %6 : vector<1x128xf32> to vector<8x128xf32>
    %8 = arith.subf %2, %7 : vector<8x128xf32>
    %9 = arith.mulf %8, %8 : vector<8x128xf32>
    %cst_5 = arith.constant dense<0.000000e+00> : vector<128xf32>
    %10 = vector.multi_reduction <add>, %9, %cst_5 [0] : vector<8x128xf32> to vector<128xf32>
    %11 = vector.shape_cast %10 : vector<128xf32> to vector<1x128xf32>
    %cst_6 = arith.constant 1.250000e-01 : f32
    %12 = vector.broadcast %cst_6 : f32 to vector<1x128xf32>
    %13 = arith.mulf %11, %12 : vector<1x128xf32>
    %14 = arith.index_cast %arg0 : i32 to index
    %c0_7 = arith.constant 0 : index
    %c0_8 = arith.constant 0 : index
    %15 = vector.load %arg3[%14, %c0_7, %c0_8] : memref<1x2x128xf32, #tpu.memory_space<vmem>>, vector<1x2x128xf32>
    %16 = vector.shape_cast %15 : vector<1x2x128xf32> to vector<2x128xf32>
    %17 = vector.extract_strided_slice %16 {offsets = [0, 0], sizes = [1, 128], strides = [1, 1]} : vector<2x128xf32> to vector<1x128xf32>
    %cst_9 = arith.constant 9.99999974E-6 : f32
    %18 = vector.broadcast %cst_9 : f32 to vector<1x128xf32>
    %19 = arith.addf %13, %18 : vector<1x128xf32>
    %20 = math.rsqrt %19 : vector<1x128xf32>
    %21 = arith.mulf %17, %20 : vector<1x128xf32>
    %22 = vector.broadcast %21 : vector<1x128xf32> to vector<8x128xf32>
    %23 = arith.mulf %8, %22 : vector<8x128xf32>
    %24 = vector.extract_strided_slice %16 {offsets = [1, 0], sizes = [1, 128], strides = [1, 1]} : vector<2x128xf32> to vector<1x128xf32>
    %25 = vector.broadcast %24 : vector<1x128xf32> to vector<8x128xf32>
    %26 = arith.addf %23, %25 : vector<8x128xf32>
    %cst_10 = arith.constant 0.000000e+00 : f32
    %27 = vector.broadcast %cst_10 : f32 to vector<8x128xf32>
    %28 = arith.maximumf %26, %27 : vector<8x128xf32>
    %c0_i32 = arith.constant 0 : i32
    %29 = arith.cmpi eq, %arg0, %c0_i32 : i32
    %30 = arith.extui %29 : i1 to i32
    %c0_i32_11 = arith.constant 0 : i32
    %31 = arith.cmpi ne, %30, %c0_i32_11 : i32
    scf.if %31 {
      %c0_19 = arith.constant 0 : index
      %c0_20 = arith.constant 0 : index
      %37 = vector.load %arg5[%c0_19, %c0_20] : memref<1x128xf32, #tpu.memory_space<vmem>>, vector<1x128xf32>
      %38 = vector.shape_cast %37 : vector<1x128xf32> to vector<1x128xf32>
      %39 = vector.broadcast %38 : vector<1x128xf32> to vector<8x128xf32>
      %c0_21 = arith.constant 0 : index
      %c0_22 = arith.constant 0 : index
      %40 = vector.load %arg6[%c0_21, %c0_22] : memref<8x128xf32, #tpu.memory_space<vmem>>, vector<8x128xf32>
      tpu.vector_store %arg6[%c0_21, %c0_22], %39 {strides = array<i32>} : memref<8x128xf32, #tpu.memory_space<vmem>>, vector<8x128xf32>,
    } else {
    }
    %c0_12 = arith.constant 0 : index
    %c0_13 = arith.constant 0 : index
    %32 = vector.load %arg6[%c0_12, %c0_13] : memref<8x128xf32, #tpu.memory_space<vmem>>, vector<8x128xf32>
    %c0_14 = arith.constant 0 : index
    %c0_15 = arith.constant 0 : index
    %33 = vector.load %arg4[%c0_14, %c0_15] : memref<128x128xf32, #tpu.memory_space<vmem>>, vector<128x128xf32>
    %cst_16 = arith.constant dense<0.000000e+00> : vector<8x128xf32>
    %34 = tpu.matmul %28, %33, %cst_16 {dimension_numbers = #tpu.dot_dimension_numbers<[1], [0], [0], [1], [0, 0, 1, 1], [], []>} : vector<8x128xf32>, vector<128x128xf32>, vector<8x128xf32> -> vector<8x128xf32>
    %35 = arith.addf %32, %34 : vector<8x128xf32>
    %c0_17 = arith.constant 0 : index
    %c0_18 = arith.constant 0 : index
    %36 = vector.load %arg6[%c0_17, %c0_18] : memref<8x128xf32, #tpu.memory_space<vmem>>, vector<8x128xf32>
    tpu.vector_store %arg6[%c0_17, %c0_18], %35 {strides = array<i32>} : memref<8x128xf32, #tpu.memory_space<vmem>>, vector<8x128xf32>,
    return
  }
  func.func @transform_0(%arg0: i32) -> (i32, i32) {
    %c0_i32 = arith.constant 0 : i32
    %c0_i32_0 = arith.constant 0 : i32
    %c0_i32_1 = arith.constant 0 : i32
    return %c0_i32, %c0_i32_0 : i32, i32
  }
  func.func @transform_1(%arg0: i32) -> (i32, i32) {
    %c0_i32 = arith.constant 0 : i32
    %c0_i32_0 = arith.constant 0 : i32
    return %c0_i32, %arg0 : i32, i32
  }
  func.func @transform_2(%arg0: i32) -> (i32, i32, i32) {
    %c0_i32 = arith.constant 0 : i32
    %c0_i32_0 = arith.constant 0 : i32
    %c0_i32_1 = arith.constant 0 : i32
    %c0_i32_2 = arith.constant 0 : i32
    return %c0_i32, %c0_i32_0, %c0_i32_1 : i32, i32, i32
  }
  func.func @transform_3(%arg0: i32) -> (i32, i32) {
    %c0_i32 = arith.constant 0 : i32
    %c0_i32_0 = arith.constant 0 : i32
    return %arg0, %c0_i32 : i32, i32
  }
  func.func @transform_4(%arg0: i32) -> (i32, i32) {
    %c0_i32 = arith.constant 0 : i32
    %c0_i32_0 = arith.constant 0 : i32
    %c0_i32_1 = arith.constant 0 : i32
    return %c0_i32, %c0_i32_0 : i32, i32
  }
  func.func @transform_5(%arg0: i32) -> (i32, i32) {
    %c0_i32 = arith.constant 0 : i32
    %c0_i32_0 = arith.constant 0 : i32
    %c0_i32_1 = arith.constant 0 : i32
    return %c0_i32, %c0_i32_0 : i32, i32
  }
}

</mosaic_0001>

<llo_original>
// kernel: tpu_custom_call.1
$region0: #{tpu_custom_call.1}
  #allocation0 [shape = 'u32[]', space=smem, size = 0x4, offset = 0x4, fixed_abs, tag = 'smem constant byte address 0x4 - core index']
  #allocation1 [shape = 'u32[144,128]{1,0:T(1,128)}', space=vmem, size = 0x12000, scoped, tag = 'internal scratch']
  %s0 = inlined_call_operand.hbm [shape: f32[8,32], index: 0, kind: input, shape index: {}]
  %s1 = inlined_call_operand.hbm [shape: f32[32,128], index: 1, kind: input, shape index: {}]
  %s2 = inlined_call_operand.vmem [shape: f32[1,2,128], index: 2, kind: input, shape index: {}]
  %s3 = inlined_call_operand.hbm [shape: f32[128,128], index: 3, kind: input, shape index: {}]
  %s4 = inlined_call_operand.vmem [shape: f32[1,128], index: 4, kind: input, shape index: {}]
  %s5 = inlined_call_operand.hbm [shape: f32[8,128], index: 5, kind: output, shape index: {}]
  %s6 = sld [smem:[#allocation0]]
  $region46: #{tpu_custom_call.1} parent=0
    _
  %s8 = ssub.s32 1, %s6
  %s9 = scalar_select 0, %s8, %s6
  $region1: #{tpu_custom_call.1} parent=0
    #allocation2 [shape = 'u8[4096]{0}', space=vmem, size = 0x1000, scoped, tag = 'input window, operand 0, single buffered']
    #allocation3 [shape = 's32[1]{0}', space=sflag, size = 0x4, scoped, tag = 'scoped memory for tpu_custom_call.1']
    #allocation4 [shape = 's32[1]{0}', space=sflag, size = 0x4, scoped, tag = 'scoped memory for tpu_custom_call.1']
    #allocation5 [shape = 'u8[16384]{0}', space=vmem, size = 0x4000, scoped, tag = 'input window, operand 1, single buffered']
    #allocation6 [shape = 's32[1]{0}', space=sflag, size = 0x4, scoped, tag = 'scoped memory for tpu_custom_call.1']
    #allocation7 [shape = 'u8[65536]{0}', space=vmem, size = 0x10000, scoped, tag = 'input window, operand 3, single buffered']
    #allocation8 [shape = 'u8[4096]{0}', space=vmem, size = 0x1000, scoped, tag = 'output window, operand 0, single buffered']
    %10 = vsyncpa [#allocation3], 0
    %11 = vsyncpa [#allocation6], 0
    %12 = vsyncpa [#allocation4], 0
    // Predicated region
    $region2: #{tpu_custom_call.1} parent=1 // pred_check
      _
    $region3: #{tpu_custom_call.1} parent=1 // pred_check_branch
      %14 = sbr.rel (0) target = $region5
    $region4: #{tpu_custom_call.1} parent=1 // pred_region
      %s16 = ssub.s32 128, 128
      %17 = vsyncadd [#allocation3], %s16
      %s19 = sshll.u32 [#allocation2], 4
      %s20 = int_to_ptr.vmem [resolvable:$true] %s19
      %22 = dma.hbm_to_vmem [thread:$0]  %s0, 128, %s20, [#allocation3]
    $region5: #{tpu_custom_call.1} parent=1 // pred_fallthru
      _
    // Predicated region
    $region6: #{tpu_custom_call.1} parent=1 // pred_check
      _
    $region7: #{tpu_custom_call.1} parent=1 // pred_check_branch
      %24 = sbr.rel (0) target = $region9
    $region8: #{tpu_custom_call.1} parent=1 // pred_region
      %s26 = ssub.s32 512, 512
      %27 = vsyncadd [#allocation6], %s26
      %s28 = sshll.u32 [#allocation5], 4
      %s29 = int_to_ptr.vmem [resolvable:$true] %s28
      %34 = dma.hbm_to_vmem [thread:$0]  %s1, 512, %s29, [#allocation6], 128, 128, 8
    $region9: #{tpu_custom_call.1} parent=1 // pred_fallthru
      _
    // Predicated region
    $region10: #{tpu_custom_call.1} parent=1 // pred_check
      _
    $region11: #{tpu_custom_call.1} parent=1 // pred_check_branch
      %36 = sbr.rel (0) target = $region13
    $region12: #{tpu_custom_call.1} parent=1 // pred_region
      _
    $region13: #{tpu_custom_call.1} parent=1 // pred_fallthru
      _
    // Predicated region
    $region14: #{tpu_custom_call.1} parent=1 // pred_check
      _
    $region15: #{tpu_custom_call.1} parent=1 // pred_check_branch
      %38 = sbr.rel (0) target = $region17
    $region16: #{tpu_custom_call.1} parent=1 // pred_region
      %s40 = ssub.s32 2048, 2048
      %41 = vsyncadd [#allocation6], %s40
      %s42 = sshll.u32 [#allocation7], 4
      %s43 = int_to_ptr.vmem [resolvable:$true] %s42
      %48 = dma.hbm_to_vmem [thread:$0]  %s3, 2048, %s43, [#allocation6], 128, 128, 8
    $region17: #{tpu_custom_call.1} parent=1 // pred_fallthru
      _
    // Predicated region
    $region18: #{tpu_custom_call.1} parent=1 // pred_check
      _
    $region19: #{tpu_custom_call.1} parent=1 // pred_check_branch
      %50 = sbr.rel (0) target = $region21
    $region20: #{tpu_custom_call.1} parent=1 // pred_region
      _
    $region21: #{tpu_custom_call.1} parent=1 // pred_fallthru
      _
    // Predicated region
    $region22: #{tpu_custom_call.1} parent=1 // pred_check
      _
    $region23: #{tpu_custom_call.1} parent=1 // pred_check_branch
      %52 = sbr.rel (0) target = $region25
    $region24: #{tpu_custom_call.1} parent=1 // pred_region
      %53 = dma.done [#allocation3], 128
    $region25: #{tpu_custom_call.1} parent=1 // pred_fallthru
      _
    // Predicated region
    $region26: #{tpu_custom_call.1} parent=1 // pred_check
      _
    $region27: #{tpu_custom_call.1} parent=1 // pred_check_branch
      %55 = sbr.rel (0) target = $region29
    $region28: #{tpu_custom_call.1} parent=1 // pred_region
      %56 = dma.done [#allocation6], 512
    $region29: #{tpu_custom_call.1} parent=1 // pred_fallthru
      _
    // Predicated region
    $region30: #{tpu_custom_call.1} parent=1 // pred_check
      _
    $region31: #{tpu_custom_call.1} parent=1 // pred_check_branch
      %58 = sbr.rel (0) target = $region33
    $region32: #{tpu_custom_call.1} parent=1 // pred_region
      %59 = dma.done [#allocation6], 2048
    $region33: #{tpu_custom_call.1} parent=1 // pred_fallthru
      _
    %v60 = vld [vmem:[#allocation2] sm:$0xff]
    %v61 = vld [vmem:[#allocation5] sm:$0xff]
    %v62 = vld [vmem:[#allocation5 + $0x8] sm:$0xff]
    %v63 = vld [vmem:[#allocation5 + $0x10] sm:$0xff]
    %v64 = vld [vmem:[#allocation5 + $0x18] sm:$0xff]
    %vm65 = vcmask 261120
    %v67 = vsel %vm65, %v60, 0
    %69 = vmatprep.subr.mxu0 0.0
    %70 = vmatpush1.msra.mxu0 %v61
    %71 = vmatprep.subr.mxu0 0.0
    %72 = vmatpush1.msra.mxu0 %v62
    %73 = vmatprep.subr.mxu0 0.0
    %74 = vmatpush1.msra.mxu0 %v63
    %75 = vmatprep.subr.mxu0 0.0
    %76 = vmatpush1.msra.mxu0 %v64
    %77 = vmatprep.subr.mxu0 0.0
    %78 = vmatpush1.msra.mxu0 0.0
    %79 = vmatprep.subr.mxu0 0.0
    %80 = vmatpush1.msra.mxu0 0.0
    %81 = vmatprep.subr.mxu0 0.0
    %82 = vmatpush1.msra.mxu0 0.0
    %83 = vmatprep.subr.mxu0 0.0
    %84 = vmatpush1.msra.mxu0 0.0
    %85 = vmatprep.subr.mxu0 0.0
    %86 = vmatpush1.msra.mxu0 0.0
    %87 = vmatprep.subr.mxu0 0.0
    %88 = vmatpush1.msra.mxu0 0.0
    %89 = vmatprep.subr.mxu0 0.0
    %90 = vmatpush1.msra.mxu0 0.0
    %91 = vmatprep.subr.mxu0 0.0
    %92 = vmatpush1.msra.mxu0 0.0
    %93 = vmatprep.subr.mxu0 0.0
    %94 = vmatpush1.msra.mxu0 0.0
    %95 = vmatprep.subr.mxu0 0.0
    %96 = vmatpush1.msra.mxu0 0.0
    %97 = vmatprep.subr.mxu0 0.0
    %98 = vmatpush1.msra.mxu0 0.0
    %99 = vmatprep.subr.mxu0 0.0
    %100 = vmatpush1.msra.mxu0 0.0
    %101 = vmatprep.subr.mxu0 0.0
    %102 = vmatpush1.msra.mxu0 0.0
    %103 = vmatprep.subr.mxu0 0.0
    %104 = vmatpush1.msra.mxu0 0.0
    %105 = vmatprep.subr.mxu0 0.0
    %106 = vmatpush1.msra.mxu0 0.0
    %107 = vmatprep.subr.mxu0 0.0
    %108 = vmatpush1.msra.mxu0 0.0
    %109 = vmatprep.subr.mxu0 0.0
    %110 = vmatpush1.msra.mxu0 0.0
    %111 = vmatprep.subr.mxu0 0.0
    %112 = vmatpush1.msra.mxu0 0.0
    %113 = vmatprep.subr.mxu0 0.0
    %114 = vmatpush1.msra.mxu0 0.0
    %115 = vmatprep.subr.mxu0 0.0
    %116 = vmatpush1.msra.mxu0 0.0
    %117 = vmatprep.subr.mxu0 0.0
    %118 = vmatpush1.msra.mxu0 0.0
    %119 = vmatprep.subr.mxu0 0.0
    %120 = vmatpush1.msra.mxu0 0.0
    %121 = vmatprep.subr.mxu0 0.0
    %122 = vmatpush1.msra.mxu0 0.0
    %123 = vmatprep.subr.mxu0 0.0
    %124 = vmatpush1.msra.mxu0 0.0
    %125 = vmatprep.subr.mxu0 0.0
    %126 = vmatpush1.msra.mxu0 0.0
    %127 = vmatprep.subr.mxu0 0.0
    %128 = vmatpush1.msra.mxu0 0.0
    %129 = vmatprep.subr.mxu0 0.0
    %130 = vmatpush1.msra.mxu0 0.0
    %131 = vmatprep.subr.mxu0 0.0
    %132 = vmatpush1.msra.mxu0 0.0
    %133 = vmatprep.mubr.f32.mxu0 0.0
    %134 = vmatmul.mubr.f32.gmra.mrb[0].mxu0 %v67
    %v135 = vpop.f32.mrb[0].mxu0
    %v136 = vadd.f32 0.0, %v135
    %v137 = vpop.f32.mrb[0].mxu0
    %138 = vdwg.mxu0
    %v139 = vrot.slane %v136, 4
    %v140 = vadd.f32 %v136, %v139
    %v141 = vrot.slane %v140, 2
    %v142 = vadd.f32 %v140, %v141
    %v143 = vrot.slane %v142, 1
    %v144 = vadd.f32 %v142, %v143
    %v145 = vmul.f32 %v144, 0.125
    %v146 = vsub.f32 %v136, %v145
    %v147 = vmul.f32 %v146, %v146
    %v148 = vrot.slane %v147, 4
    %v149 = vadd.f32 %v147, %v148
    %v150 = vrot.slane %v149, 2
    %v151 = vadd.f32 %v149, %v150
    %v152 = vrot.slane %v151, 1
    %v153 = vadd.f32 %v151, %v152
    %v154 = vmul.f32 %v153, 0.125
    %s155 = smul.u32 0, 2
    %s156 = scalar_lea.vmem %s2, %s155
    %v157 = vld [vmem:[%s156] sm:$0x3]
    %v158 = vadd.f32 %v154, 1e-05
    %v159 = vrsqrt.pop %v158
    %v160 = vmul.f32 %v157, %v159
    %v161 = vlaneseq
    %v162 = vshrl.u32 %v161, 7
    %v163 = vsub.s32 0, %v162
    %v164 = vrot.slane %v160, %v163
    %v165 = vmul.f32 %v146, %v164
    %v166 = vlaneseq
    %v167 = vshrl.u32 %v166, 7
    %v168 = vsub.s32 1, %v167
    %v169 = vrot.slane %v157, %v168
    %v170 = vadd.f32 %v165, %v169
    %v171 = vmax.f32 %v170, 0.0
    %p172 = scmp.eq.s32.totalorder 0, 0
    // Predicated region
    $region34: #{tpu_custom_call.1} parent=1 // pred_check
      %p173 = pneg %p172
    $region35: #{tpu_custom_call.1} parent=1 // pred_check_branch
      %175 = sbr.rel (%p173) target = $region37
    $region36: #{tpu_custom_call.1} parent=1 // pred_region
      %v176 = vld [vmem:[%s4] sm:$0x1]
      %v178 = vlaneseq
      %v179 = vshrl.u32 %v178, 7
      %v180 = vsub.s32 0, %v179
      %v181 = vrot.slane %v176, %v180
      %183 = vst [vmem:[#allocation8] sm:$0xff] %v181
    $region37: #{tpu_custom_call.1} parent=1 // pred_fallthru
      _
    %v184 = vld [vmem:[#allocation8] sm:$0xff]
    %v185 = vld [vmem:[#allocation7] sm:$0xff]
    %v186 = vld [vmem:[#allocation7 + $0x8] sm:$0xff]
    %v187 = vld [vmem:[#allocation7 + $0x10] sm:$0xff]
    %v188 = vld [vmem:[#allocation7 + $0x18] sm:$0xff]
    %v189 = vld [vmem:[#allocation7 + $0x20] sm:$0xff]
    %v190 = vld [vmem:[#allocation7 + $0x28] sm:$0xff]
    %v191 = vld [vmem:[#allocation7 + $0x30] sm:$0xff]
    %v192 = vld [vmem:[#allocation7 + $0x38] sm:$0xff]
    %v193 = vld [vmem:[#allocation7 + $0x40] sm:$0xff]
    %v194 = vld [vmem:[#allocation7 + $0x48] sm:$0xff]
    %v195 = vld [vmem:[#allocation7 + $0x50] sm:$0xff]
    %v196 = vld [vmem:[#allocation7 + $0x58] sm:$0xff]
    %v197 = vld [vmem:[#allocation7 + $0x60] sm:$0xff]
    %v198 = vld [vmem:[#allocation7 + $0x68] sm:$0xff]
    %v199 = vld [vmem:[#allocation7 + $0x70] sm:$0xff]
    %v200 = vld [vmem:[#allocation7 + $0x78] sm:$0xff]
    %201 = vmatprep.subr.mxu0 0.0
    %202 = vmatpush1.msra.mxu0 %v185
    %203 = vmatprep.subr.mxu0 0.0
    %204 = vmatpush1.msra.mxu0 %v186
    %205 = vmatprep.subr.mxu0 0.0
    %206 = vmatpush1.msra.mxu0 %v187
    %207 = vmatprep.subr.mxu0 0.0
    %208 = vmatpush1.msra.mxu0 %v188
    %209 = vmatprep.subr.mxu0 0.0
    %210 = vmatpush1.msra.mxu0 %v189
    %211 = vmatprep.subr.mxu0 0.0
    %212 = vmatpush1.msra.mxu0 %v190
    %213 = vmatprep.subr.mxu0 0.0
    %214 = vmatpush1.msra.mxu0 %v191
    %215 = vmatprep.subr.mxu0 0.0
    %216 = vmatpush1.msra.mxu0 %v192
    %217 = vmatprep.subr.mxu0 0.0
    %218 = vmatpush1.msra.mxu0 %v193
    %219 = vmatprep.subr.mxu0 0.0
    %220 = vmatpush1.msra.mxu0 %v194
    %221 = vmatprep.subr.mxu0 0.0
    %222 = vmatpush1.msra.mxu0 %v195
    %223 = vmatprep.subr.mxu0 0.0
    %224 = vmatpush1.msra.mxu0 %v196
    %225 = vmatprep.subr.mxu0 0.0
    %226 = vmatpush1.msra.mxu0 %v197
    %227 = vmatprep.subr.mxu0 0.0
    %228 = vmatpush1.msra.mxu0 %v198
    %229 = vmatprep.subr.mxu0 0.0
    %230 = vmatpush1.msra.mxu0 %v199
    %231 = vmatprep.subr.mxu0 0.0
    %232 = vmatpush1.msra.mxu0 %v200
    %233 = vmatprep.subr.mxu0 0.0
    %234 = vmatpush1.msra.mxu0 0.0
    %235 = vmatprep.subr.mxu0 0.0
    %236 = vmatpush1.msra.mxu0 0.0
    %237 = vmatprep.subr.mxu0 0.0
    %238 = vmatpush1.msra.mxu0 0.0
    %239 = vmatprep.subr.mxu0 0.0
    %240 = vmatpush1.msra.mxu0 0.0
    %241 = vmatprep.subr.mxu0 0.0
    %242 = vmatpush1.msra.mxu0 0.0
    %243 = vmatprep.subr.mxu0 0.0
    %244 = vmatpush1.msra.mxu0 0.0
    %245 = vmatprep.subr.mxu0 0.0
    %246 = vmatpush1.msra.mxu0 0.0
    %247 = vmatprep.subr.mxu0 0.0
    %248 = vmatpush1.msra.mxu0 0.0
    %249 = vmatprep.subr.mxu0 0.0
    %250 = vmatpush1.msra.mxu0 0.0
    %251 = vmatprep.subr.mxu0 0.0
    %252 = vmatpush1.msra.mxu0 0.0
    %253 = vmatprep.subr.mxu0 0.0
    %254 = vmatpush1.msra.mxu0 0.0
    %255 = vmatprep.subr.mxu0 0.0
    %256 = vmatpush1.msra.mxu0 0.0
    %257 = vmatprep.subr.mxu0 0.0
    %258 = vmatpush1.msra.mxu0 0.0
    %259 = vmatprep.subr.mxu0 0.0
    %260 = vmatpush1.msra.mxu0 0.0
    %261 = vmatprep.subr.mxu0 0.0
    %262 = vmatpush1.msra.mxu0 0.0
    %263 = vmatprep.subr.mxu0 0.0
    %264 = vmatpush1.msra.mxu0 0.0
    %265 = vmatprep.mubr.f32.mxu0 0.0
    %266 = vmatmul.mubr.f32.gmra.mrb[0].mxu0 %v171
    %v267 = vpop.f32.mrb[0].mxu0
    %v268 = vadd.f32 0.0, %v267
    %v269 = vpop.f32.mrb[0].mxu0
    %270 = vdwg.mxu0
    %v271 = vadd.f32 %v184, %v268
    %272 = vst [vmem:[#allocation8] sm:$0xff] %v271
    // Predicated region
    $region38: #{tpu_custom_call.1} parent=1 // pred_check
      _
    $region39: #{tpu_custom_call.1} parent=1 // pred_check_branch
      %274 = sbr.rel (0) target = $region41
    $region40: #{tpu_custom_call.1} parent=1 // pred_region
      %s276 = ssub.s32 128, 128
      %277 = vsyncadd [#allocation4], %s276
      %s279 = sshll.u32 [#allocation8], 4
      %s280 = int_to_ptr.vmem [resolvable:$true] %s279
      %282 = dma.vmem_to_hbm [thread:$0]  %s280, 128, %s5, [#allocation4]
    $region41: #{tpu_custom_call.1} parent=1 // pred_fallthru
      _
    // Predicated region
    $region42: #{tpu_custom_call.1} parent=1 // pred_check
      _
    $region43: #{tpu_custom_call.1} parent=1 // pred_check_branch
      %284 = sbr.rel (0) target = $region45
    $region44: #{tpu_custom_call.1} parent=1 // pred_region
      %285 = dma.done [#allocation4], 128
    $region45: #{tpu_custom_call.1} parent=1 // pred_fallthru
      _
    %286 = vsyncpa [#allocation3], 1
    %287 = vsyncpa [#allocation6], 1
    %288 = vsyncpa [#allocation4], 1

</llo_original>
